<compile_context>
chip_gen: v7x
topology: tpu7x:2x2x1
jax: 0.10.0
libtpu: 0.0.40
codegen_flags: <defaults>
</compile_context>

<pallas_src>
import math
import functools

import jax
import jax.numpy as jnp
from jax.experimental import pallas as pl
from jax.experimental.pallas import tpu as pltpu

NUM_HEADS = 8
_VMEM_LIMIT = 48 * 1024 * 1024  # fits v7x's 64 MiB physical, plenty on v5e/v6e


def _round_up(x, m):
    return ((x + m - 1) // m) * m


def _pick_tile(n, max_tile=1024):
    t = max_tile
    while t >= 128:
        if n % t == 0:
            return t
        t -= 128
    raise ValueError(f"N={n} must be divisible by a multiple of 128 (pad N in the wrapper).")


def _head_mask_t(num_heads, hidden, dtype=jnp.float32):
    """(num_heads, hidden) one-hot head-membership mask, generated in-kernel."""
    cp = hidden // num_heads
    h_idx = jax.lax.broadcasted_iota(jnp.int32, (num_heads, hidden), 0)
    c_idx = jax.lax.broadcasted_iota(jnp.int32, (num_heads, hidden), 1)
    lo = h_idx * cp
    return ((c_idx >= lo) & (c_idx < lo + cp)).astype(dtype)


# -----------------------------------------------------------------------------
# Kernel 1: DimReduction (Linear(in_dim->hidden, no bias) + ReLU) fused with the
#           bag-attention v_proj.  Tiled over the instance axis.
#           MXU operands in the weights' dtype (bf16 on the perf path),
#           outputs stored in feat_ref/vbag_ref dtype (bf16 on the perf path).
# -----------------------------------------------------------------------------
def _feat_kernel(x_ref, wdr_ref, wvb_ref, bvb_ref, feat_ref, vbag_ref):
    f32 = jnp.float32
    xc = x_ref[...].astype(wdr_ref.dtype)
    f = jnp.maximum(jnp.dot(xc, wdr_ref[...], preferred_element_type=f32), 0.0)
    feat_ref[...] = f.astype(feat_ref.dtype)
    fc = f.astype(wvb_ref.dtype)
    vbag_ref[...] = (jnp.dot(fc, wvb_ref[...], preferred_element_type=f32)
                     + bvb_ref[...]).astype(vbag_ref.dtype)


def featurize(x, w_dr, wv_bag, bv_bag, *, tile, out_dtype):
    n, din = x.shape
    hid = w_dr.shape[1]
    return pl.pallas_call(
        _feat_kernel,
        out_shape=(jax.ShapeDtypeStruct((n, hid), out_dtype),
                   jax.ShapeDtypeStruct((n, hid), out_dtype)),
        grid=(n // tile,),
        in_specs=[pl.BlockSpec((tile, din), lambda i: (i, 0)),
                  pl.BlockSpec((din, hid), lambda i: (0, 0)),
                  pl.BlockSpec((hid, hid), lambda i: (0, 0)),
                  pl.BlockSpec((1, hid), lambda i: (0, 0))],
        out_specs=(pl.BlockSpec((tile, hid), lambda i: (i, 0)),
                   pl.BlockSpec((tile, hid), lambda i: (i, 0))),
        compiler_params=pltpu.CompilerParams(
            dimension_semantics=("parallel",),
            vmem_limit_bytes=_VMEM_LIMIT),
    )(x, w_dr, wv_bag, bv_bag)


# -----------------------------------------------------------------------------
# Kernel 2: single pass over the instance axis with VMEM-resident per-token
#           weight stacks.  Online softmax across chunks; per-split partial
#           state (m, l, acc_o, acc_bag) is emitted as outputs so the chunk
#           range can be split across TensorCores (grid axis 0 is "parallel").
#           Pre-softmax scaled scores are stored directly in (H, n_token, N).
# -----------------------------------------------------------------------------
def _attn_stream_kernel(q_ref, feat_ref, vbag_ref,
                        wq_ref, bq_ref, wk_ref, bk_ref, wv_ref, bv_ref,
                        attn_ref, m_ref, l_ref, acco_ref, accb_ref,
                        qh_sc, *, num_heads, n_token):
    f32 = jnp.float32
    j = pl.program_id(1)
    hidden = feat_ref.shape[-1]
    cp = hidden // num_heads
    scale = 1.0 / math.sqrt(cp)
    H = num_heads

    @pl.when(j == 0)
    def _init():
        mask_t = _head_mask_t(H, hidden)                                 # (H, hidden)
        for t in range(n_token):
            qv = (jnp.dot(q_ref[t], wq_ref[t], preferred_element_type=f32)
                  + bq_ref[t]) * scale                                   # (1, hidden)
            qh_sc[pl.ds(t * H, H), :] = mask_t * qv                      # head-masked, pre-scaled
        m_ref[...] = jnp.full(m_ref.shape, -jnp.inf, f32)
        l_ref[...] = jnp.zeros(l_ref.shape, f32)
        acco_ref[...] = jnp.zeros(acco_ref.shape, f32)
        accb_ref[...] = jnp.zeros(accb_ref.shape, f32)

    feat = feat_ref[...]                                                 # (TILE, hidden) bf16
    vbag = vbag_ref[...]                                                 # (TILE, hidden) bf16
    for t in range(n_token):                                             # n_token is small -> unroll
        sl = pl.ds(t * H, H)
        k = jnp.dot(feat, wk_ref[t], preferred_element_type=f32) + bk_ref[t]
        v = jnp.dot(feat, wv_ref[t], preferred_element_type=f32) + bv_ref[t]

        # per-head scaled scores (H, TILE): contract the channel axis.
        s = jnp.einsum('hc,nc->hn', qh_sc[sl, :], k, preferred_element_type=f32)
        attn_ref[:, t, :] = s                                            # final (H, T, N) layout

        # online-softmax accumulation (state lives in per-split output blocks)
        m_prev = m_ref[sl, :]
        m_new = jnp.maximum(m_prev, jnp.max(s, axis=-1, keepdims=True))  # (H, 1)
        alpha = jnp.exp(m_prev - m_new)
        p = jnp.exp(s - m_new)                                           # (H, TILE)
        l_ref[sl, :] = alpha * l_ref[sl, :] + jnp.sum(p, axis=-1, keepdims=True)
        acco_ref[sl, :] = alpha * acco_ref[sl, :] + jnp.dot(
            p, v, preferred_element_type=f32)                            # (H, hidden)
        accb_ref[sl, :] = alpha * accb_ref[sl, :] + jnp.dot(
            p.astype(vbag.dtype), vbag, preferred_element_type=f32)      # (H, hidden)
        m_ref[sl, :] = m_new


def attention_stream(q, feat, vbag, wq, bq, wk, bk, wv, bv, *,
                     num_heads, n_token, tile, n_splits):
    n, hidden = feat.shape
    n_chunks = n // tile
    cps = n_chunks // n_splits
    TH = n_token * num_heads
    const3 = lambda c, j: (0, 0, 0)
    chunk2 = lambda c, j: (c * cps + j, 0)
    state3 = lambda c, j: (c, 0, 0)
    kernel = functools.partial(_attn_stream_kernel,
                               num_heads=num_heads, n_token=n_token)
    return pl.pallas_call(
        kernel,
        out_shape=(jax.ShapeDtypeStruct((num_heads, n_token, n), jnp.float32),
                   jax.ShapeDtypeStruct((n_splits, TH, 1), jnp.float32),
                   jax.ShapeDtypeStruct((n_splits, TH, 1), jnp.float32),
                   jax.ShapeDtypeStruct((n_splits, TH, hidden), jnp.float32),
                   jax.ShapeDtypeStruct((n_splits, TH, hidden), jnp.float32)),
        grid=(n_splits, cps),
        in_specs=[
            pl.BlockSpec((n_token, 1, hidden), const3),       # q params
            pl.BlockSpec((tile, hidden), chunk2),             # feat chunk (bf16)
            pl.BlockSpec((tile, hidden), chunk2),             # bag v_proj chunk (bf16)
            pl.BlockSpec((n_token, hidden, hidden), const3),  # wq stack (VMEM-resident)
            pl.BlockSpec((n_token, 1, hidden), const3),       # bq
            pl.BlockSpec((n_token, hidden, hidden), const3),  # wk stack (VMEM-resident)
            pl.BlockSpec((n_token, 1, hidden), const3),       # bk
            pl.BlockSpec((n_token, hidden, hidden), const3),  # wv stack (VMEM-resident)
            pl.BlockSpec((n_token, 1, hidden), const3),       # bv
        ],
        out_specs=(
            pl.BlockSpec((num_heads, n_token, tile), lambda c, j: (0, 0, c * cps + j)),
            pl.BlockSpec((None, TH, 1), state3),              # running max  (per split)
            pl.BlockSpec((None, TH, 1), state3),              # running sum  (per split)
            pl.BlockSpec((None, TH, hidden), state3),         # acc attn@v   (per split)
            pl.BlockSpec((None, TH, hidden), state3),         # acc attn@v_bag (per split)
        ),
        scratch_shapes=[pltpu.VMEM((TH, hidden), jnp.float32)],   # head-masked q
        compiler_params=pltpu.CompilerParams(
            dimension_semantics=("parallel", "arbitrary"),
            vmem_limit_bytes=_VMEM_LIMIT),
    )(q, feat, vbag, wq, bq, wk, bk, wv, bv)


# -----------------------------------------------------------------------------
# Kernel 3: merge split partials (online-softmax combine) and run the tiny tail:
#           per-token out_proj + LayerNorm + classifier (sub_preds), and the bag
#           mean + out_proj + LayerNorm + Slide_classifier (logits).
# -----------------------------------------------------------------------------
def _finalize_kernel(m_ref, l_ref, ao_ref, ab_ref,
                     wo_ref, bo_ref, g_ref, be_ref, wc_ref, bc_ref,
                     bwo_ref, bbo_ref, bg_ref, bbe_ref, bwc_ref, bbc_ref,
                     preds_ref, logits_ref, *, num_heads, n_token, n_splits):
    f32 = jnp.float32
    H = num_heads
    hidden = ao_ref.shape[-1]

    # --- combine per-split online-softmax partials ---
    m = m_ref[0]
    l = l_ref[0]
    ao = ao_ref[0]
    ab = ab_ref[0]
    for c in range(1, n_splits):
        m2 = m_ref[c]
        mn = jnp.maximum(m, m2)
        a1 = jnp.exp(m - mn)
        a2 = jnp.exp(m2 - mn)
        l = a1 * l + a2 * l_ref[c]
        ao = a1 * ao + a2 * ao_ref[c]
        ab = a1 * ab + a2 * ab_ref[c]
        m = mn
    inv_l = 1.0 / l                                             # (TH, 1)
    mask_t = _head_mask_t(H, hidden)                            # (H, hidden)

    def _layernorm(o, g, b):
        mu = jnp.mean(o, axis=-1, keepdims=True)
        var = jnp.mean((o - mu) ** 2, axis=-1, keepdims=True)
        return (o - mu) * jax.lax.rsqrt(var + 1e-6) * g + b

    bag_sum = jnp.zeros((1, hidden), f32)
    for t in range(n_token):
        sl = slice(t * H, (t + 1) * H)
        # recombine heads: out[c] = acc[head(c), c] / l[head(c)]
        o_heads = ao[sl] * inv_l[sl]                            # (H, hidden)
        out_vec = jnp.sum(mask_t * o_heads, axis=0, keepdims=True)   # (1, hidden)
        o = jnp.dot(out_vec, wo_ref[t], preferred_element_type=f32) + bo_ref[t]
        ln = _layernorm(o, g_ref[t], be_ref[t])
        pred = jnp.dot(ln, wc_ref[t], preferred_element_type=f32) + bc_ref[t]
        preds_ref[pl.ds(t, 1), :] = pred.astype(preds_ref.dtype)

        # bag partial: softmax_t @ v_bag (heads recombined); mean over tokens.
        b_heads = ab[sl] * inv_l[sl]
        bag_sum = bag_sum + jnp.sum(mask_t * b_heads, axis=0, keepdims=True)

    fb = bag_sum * (1.0 / n_token)
    o = jnp.dot(fb, bwo_ref[...], preferred_element_type=f32) + bbo_ref[...]
    ln = _layernorm(o, bg_ref[...], bbe_ref[...])
    logits_ref[...] = (jnp.dot(ln, bwc_ref[...], preferred_element_type=f32)
                       + bbc_ref[...]).astype(logits_ref.dtype)


def finalize(m_p, l_p, ao_p, ab_p, sp, wc_sub, bc_sub, bp, wc_bag, bc_bag, *,
             num_heads, n_token, n_splits, c_pad):
    hidden = ao_p.shape[-1]
    TH = n_token * num_heads
    f3 = lambda i: (0, 0, 0)
    f2 = lambda i: (0, 0)
    kernel = functools.partial(_finalize_kernel, num_heads=num_heads,
                               n_token=n_token, n_splits=n_splits)
    return pl.pallas_call(
        kernel,
        out_shape=(jax.ShapeDtypeStruct((n_token, c_pad), jnp.float32),
                   jax.ShapeDtypeStruct((1, c_pad), jnp.float32)),
        grid=(1,),
        in_specs=[
            pl.BlockSpec((n_splits, TH, 1), f3),
            pl.BlockSpec((n_splits, TH, 1), f3),
            pl.BlockSpec((n_splits, TH, hidden), f3),
            pl.BlockSpec((n_splits, TH, hidden), f3),
            pl.BlockSpec((n_token, hidden, hidden), f3),   # per-token wo
            pl.BlockSpec((n_token, 1, hidden), f3),        # bo
            pl.BlockSpec((n_token, 1, hidden), f3),        # ln gamma
            pl.BlockSpec((n_token, 1, hidden), f3),        # ln beta
            pl.BlockSpec((n_token, hidden, c_pad), f3),    # classifier w (lane-padded)
            pl.BlockSpec((n_token, 1, c_pad), f3),         # classifier b (lane-padded)
            pl.BlockSpec((hidden, hidden), f2),            # bag wo
            pl.BlockSpec((1, hidden), f2),                 # bag bo
            pl.BlockSpec((1, hidden), f2),                 # bag ln gamma
            pl.BlockSpec((1, hidden), f2),                 # bag ln beta
            pl.BlockSpec((hidden, c_pad), f2),             # slide classifier w
            pl.BlockSpec((1, c_pad), f2),                  # slide classifier b
        ],
        out_specs=(pl.BlockSpec((n_token, c_pad), f2),
                   pl.BlockSpec((1, c_pad), f2)),
        compiler_params=pltpu.CompilerParams(
            dimension_semantics=("arbitrary",)),
    )(m_p, l_p, ao_p, ab_p, sp['wo'], sp['bo'], sp['ln_g'], sp['ln_b'],
      wc_sub, bc_sub, bp['wo'], bp['bo'], bp['ln_g'], bp['ln_b'], wc_bag, bc_bag)


# -----------------------------------------------------------------------------
# Parameter construction (deterministic, synthetic)
# -----------------------------------------------------------------------------
def init_params(key, in_dim, hidden, num_classes, n_token):
    ks = iter(jax.random.split(key, 64))
    nrm = lambda shape, s=0.02: s * jax.random.normal(next(ks), shape, jnp.float32)
    return {
        'dimred_w': nrm((in_dim, hidden)),
        'q': 1e-6 * jax.random.normal(next(ks), (n_token, 1, hidden), jnp.float32),
        'sub': {
            'wq': nrm((n_token, hidden, hidden)),
            'bq': nrm((n_token, 1, hidden)),
            'wk': nrm((n_token, hidden, hidden)),
            'bk': nrm((n_token, 1, hidden)),
            'wv': nrm((n_token, hidden, hidden)),
            'bv': nrm((n_token, 1, hidden)),
            'wo': nrm((n_token, hidden, hidden)),
            'bo': nrm((n_token, 1, hidden)),
            'ln_g': jnp.ones((n_token, 1, hidden), jnp.float32),
            'ln_b': jnp.zeros((n_token, 1, hidden), jnp.float32),
            'wc': nrm((n_token, hidden, num_classes)),
            'bc': nrm((n_token, 1, num_classes)),
        },
        'bag': {
            'wv': nrm((hidden, hidden)),
            'bv': nrm((1, hidden)),
            'wo': nrm((hidden, hidden)),
            'bo': nrm((1, hidden)),
            'ln_g': jnp.ones((1, hidden), jnp.float32),
            'ln_b': jnp.zeros((1, hidden), jnp.float32),
            'wc': nrm((hidden, num_classes)),
            'bc': nrm((1, num_classes)),
        },
    }


# -----------------------------------------------------------------------------
# AC_MIL forward (wrapper = layout / dtype plumbing; compute lives in kernels)
# -----------------------------------------------------------------------------
def ac_mil_forward(x, params, *, n_token, num_classes, tile=None,
                   compute_dtype=jnp.bfloat16, n_splits=None):
    # x: (1, N, in_dim)  ->  squeeze batch (reference module always uses batch 1)
    x2 = x[0]
    n, _ = x2.shape
    hidden = params['dimred_w'].shape[1]
    assert hidden % NUM_HEADS == 0 and hidden % 128 == 0, \
        "hidden must be a multiple of 128 (pad at the wrapper for odd configs)"
    if tile is None:
        tile = _pick_tile(n)
    assert n % tile == 0 and tile % 128 == 0
    n_chunks = n // tile
    if n_splits is None:
        # leading "parallel" axis: split the instance/chunk range for megacore (v7x).
        n_splits = 2 if (n_chunks % 2 == 0 and n_chunks >= 2) else 1
    assert n_chunks % n_splits == 0

    sp, bp = params['sub'], params['bag']
    c_pad = _round_up(num_classes, 128)
    wc_sub = jnp.pad(sp['wc'], ((0, 0), (0, 0), (0, c_pad - num_classes)))
    bc_sub = jnp.pad(sp['bc'], ((0, 0), (0, 0), (0, c_pad - num_classes)))
    wc_bag = jnp.pad(bp['wc'], ((0, 0), (0, c_pad - num_classes)))
    bc_bag = jnp.pad(bp['bc'], ((0, 0), (0, c_pad - num_classes)))

    # dtype plumbing: cast the matmul weight stacks (one-time, tiny).
    cd = compute_dtype
    w_dr = params['dimred_w'].astype(cd)
    wv_bag = bp['wv'].astype(cd)
    q_cd = params['q'].astype(cd)
    wq = sp['wq'].astype(cd)
    wk = sp['wk'].astype(cd)
    wv = sp['wv'].astype(cd)

    # K1: DimReduction + bag v_proj (bf16 MXU, bf16 feat/vbag storage).
    feat, vbag = featurize(x2, w_dr, wv_bag, bp['bv'], tile=tile, out_dtype=cd)

    # K2: single pass over instances, resident weight stacks, online softmax.
    attns, m_p, l_p, ao_p, ab_p = attention_stream(
        q_cd, feat, vbag, wq, sp['bq'], wk, sp['bk'], wv, sp['bv'],
        num_heads=NUM_HEADS, n_token=n_token, tile=tile, n_splits=n_splits)

    # K3: merge split partials + per-token / bag tail math.
    preds_pad, logits_pad = finalize(
        m_p, l_p, ao_p, ab_p, sp, wc_sub, bc_sub, bp, wc_bag, bc_bag,
        num_heads=NUM_HEADS, n_token=n_token, n_splits=n_splits, c_pad=c_pad)

    sub_preds = preds_pad[:, :num_classes]                       # (n_token, C)
    logits = logits_pad[:, :num_classes]                         # (1, C)
    return {'logits': logits, 'sub_preds': sub_preds, 'attns': attns}


# -----------------------------------------------------------------------------
# Pure-JAX reference (same math, f32) for a sanity check
# -----------------------------------------------------------------------------
def reference_forward(x, params, *, n_token, num_classes):
    x2 = x[0]
    feat = jnp.maximum(x2 @ params['dimred_w'], 0.0)            # (N, hidden)
    hidden = feat.shape[1]
    cp = hidden // NUM_HEADS
    sp = params['sub']

    def heads(a):  # (T, hidden) -> (H, T, cp)
        t = a.shape[0]
        return jnp.transpose(a.reshape(t, NUM_HEADS, cp), (1, 0, 2))

    attns_list, preds_list = [], []
    for i in range(n_token):
        q = params['q'][i] @ sp['wq'][i] + sp['bq'][i]          # (1, hidden)
        k = feat @ sp['wk'][i] + sp['bk'][i]
        v = feat @ sp['wv'][i] + sp['bv'][i]
        qh, kh, vh = heads(q), heads(k), heads(v)               # (H, *, cp)
        sc = jnp.einsum('hqc,hnc->hqn', qh, kh) / math.sqrt(cp)  # (H, 1, N)
        attns_list.append(sc)
        p = jax.nn.softmax(sc, axis=-1)
        o = jnp.einsum('hqn,hnc->hqc', p, vh)                   # (H, 1, cp)
        o = jnp.transpose(o, (1, 0, 2)).reshape(1, hidden)
        o = o @ sp['wo'][i] + sp['bo'][i]
        mu = o.mean(-1, keepdims=True)
        var = ((o - mu) ** 2).mean(-1, keepdims=True)
        o = (o - mu) / jnp.sqrt(var + 1e-6) * sp['ln_g'][i] + sp['ln_b'][i]
        preds_list.append(o @ sp['wc'][i] + sp['bc'][i])
    attns = jnp.concatenate(attns_list, axis=1)                 # (H, n_token, N)
    sub_preds = jnp.concatenate(preds_list, axis=0)

    bp = params['bag']
    pm = jax.nn.softmax(attns, axis=-1).mean(axis=1, keepdims=True)   # (H, 1, N)
    v = feat @ bp['wv'] + bp['bv']
    vh = heads(v)                                               # (H, N, cp)
    o = jnp.einsum('hqn,hnc->hqc', pm, vh)                      # (H, 1, cp)
    o = jnp.transpose(o, (1, 0, 2)).reshape(1, hidden)
    o = o @ bp['wo'] + bp['bo']
    mu = o.mean(-1, keepdims=True)
    var = ((o - mu) ** 2).mean(-1, keepdims=True)
    o = (o - mu) / jnp.sqrt(var + 1e-6) * bp['ln_g'] + bp['ln_b']
    logits = o @ bp['wc'] + bp['bc']
    return {'logits': logits, 'sub_preds': sub_preds, 'attns': attns}


if __name__ == "__main__":
    IN_DIM, HIDDEN, NUM_CLASSES, N_TOKEN, N_INST = 256, 128, 4, 2, 512
    TILE = 128   # 4 chunks -> 2 per megacore split: exercises online softmax + split merge

    key = jax.random.PRNGKey(0)
    kx, kp = jax.random.split(key)
    x = jax.random.normal(kx, (1, N_INST, IN_DIM), jnp.float32)
    params = init_params(kp, IN_DIM, HIDDEN, NUM_CLASSES, N_TOKEN)

    ref = reference_forward(x, params, n_token=N_TOKEN, num_classes=NUM_CLASSES)

    # Exact-parity check (f32 MXU path).
    out32 = ac_mil_forward(x, params, n_token=N_TOKEN, num_classes=NUM_CLASSES,
                           tile=TILE, compute_dtype=jnp.float32)
    jax.block_until_ready(out32)
    for k in ('logits', 'sub_preds', 'attns'):
        assert out32[k].shape == ref[k].shape, (k, out32[k].shape, ref[k].shape)
        assert jnp.allclose(out32[k], ref[k], atol=2e-4, rtol=1e-3), \
            (k, float(jnp.max(jnp.abs(out32[k] - ref[k]))))

    # Performance path (bf16 MXU operands + bf16 feat/vbag storage) -- looser tolerance.
    out = ac_mil_forward(x, params, n_token=N_TOKEN, num_classes=NUM_CLASSES, tile=TILE)
    jax.block_until_ready(out)
    for k in ('logits', 'sub_preds', 'attns'):
        assert out[k].shape == ref[k].shape, (k, out[k].shape, ref[k].shape)
        assert jnp.allclose(out[k], ref[k], atol=2e-2, rtol=1e-1), \
            (k, float(jnp.max(jnp.abs(out[k] - ref[k]))))

    print("KERNEL_OK")
</pallas_src>

<mosaic_0001>
module attributes {stable_mosaic.version = 11 : i64} {
  func.func @_feat_kernel(%arg0: i32, %arg1: memref<128x256xf32, #tpu.memory_space<vmem>>, %arg2: memref<256x128xf32, #tpu.memory_space<vmem>>, %arg3: memref<128x128xf32, #tpu.memory_space<vmem>>, %arg4: memref<1x128xf32, #tpu.memory_space<vmem>>, %arg5: memref<128x128xf32, #tpu.memory_space<vmem>>, %arg6: memref<128x128xf32, #tpu.memory_space<vmem>>) attributes {dimension_semantics = [#tpu.dimension_semantics<parallel>], iteration_bounds = array<i64: 4>, scalar_prefetch = 0 : i64, scratch_operands = 0 : i64, tpu.core_type = #tpu.core_type<tc>, window_params = [{transform_indices = @transform_0, window_bounds = array<i64: 128, 256>}, {pipeline_mode = #tpu.pipeline_mode<synchronous>, transform_indices = @transform_1, window_bounds = array<i64: 256, 128>}, {pipeline_mode = #tpu.pipeline_mode<synchronous>, transform_indices = @transform_2, window_bounds = array<i64: 128, 128>}, {pipeline_mode = #tpu.pipeline_mode<synchronous>, transform_indices = @transform_3, window_bounds = array<i64: 1, 128>}, {transform_indices = @transform_4, window_bounds = array<i64: 128, 128>}, {transform_indices = @transform_5, window_bounds = array<i64: 128, 128>}]} {
    %c0 = arith.constant 0 : index
    %c0_0 = arith.constant 0 : index
    %0 = vector.load %arg1[%c0, %c0_0] : memref<128x256xf32, #tpu.memory_space<vmem>>, vector<128x256xf32>
    %c0_1 = arith.constant 0 : index
    %c0_2 = arith.constant 0 : index
    %1 = vector.load %arg2[%c0_1, %c0_2] : memref<256x128xf32, #tpu.memory_space<vmem>>, vector<256x128xf32>
    %cst = arith.constant dense<0.000000e+00> : vector<128x128xf32>
    %2 = tpu.matmul %0, %1, %cst {dimension_numbers = #tpu.dot_dimension_numbers<[1], [0], [0], [1], [0, 0, 1, 1], [], []>} : vector<128x256xf32>, vector<256x128xf32>, vector<128x128xf32> -> vector<128x128xf32>
    %cst_3 = arith.constant 0.000000e+00 : f32
    %3 = vector.broadcast %cst_3 : f32 to vector<128x128xf32>
    %4 = arith.maximumf %2, %3 : vector<128x128xf32>
    %c0_4 = arith.constant 0 : index
    %c0_5 = arith.constant 0 : index
    %5 = vector.load %arg5[%c0_4, %c0_5] : memref<128x128xf32, #tpu.memory_space<vmem>>, vector<128x128xf32>
    tpu.vector_store %arg5[%c0_4, %c0_5], %4 {strides = array<i32>} : memref<128x128xf32, #tpu.memory_space<vmem>>, vector<128x128xf32>,
    %c0_6 = arith.constant 0 : index
    %c0_7 = arith.constant 0 : index
    %6 = vector.load %arg3[%c0_6, %c0_7] : memref<128x128xf32, #tpu.memory_space<vmem>>, vector<128x128xf32>
    %cst_8 = arith.constant dense<0.000000e+00> : vector<128x128xf32>
    %7 = tpu.matmul %4, %6, %cst_8 {dimension_numbers = #tpu.dot_dimension_numbers<[1], [0], [0], [1], [0, 0, 1, 1], [], []>} : vector<128x128xf32>, vector<128x128xf32>, vector<128x128xf32> -> vector<128x128xf32>
    %c0_9 = arith.constant 0 : index
    %c0_10 = arith.constant 0 : index
    %8 = vector.load %arg4[%c0_9, %c0_10] : memref<1x128xf32, #tpu.memory_space<vmem>>, vector<1x128xf32>
    %9 = vector.broadcast %8 : vector<1x128xf32> to vector<128x128xf32>
    %10 = arith.addf %7, %9 : vector<128x128xf32>
    %c0_11 = arith.constant 0 : index
    %c0_12 = arith.constant 0 : index
    %11 = vector.load %arg6[%c0_11, %c0_12] : memref<128x128xf32, #tpu.memory_space<vmem>>, vector<128x128xf32>
    tpu.vector_store %arg6[%c0_11, %c0_12], %10 {strides = array<i32>} : memref<128x128xf32, #tpu.memory_space<vmem>>, vector<128x128xf32>,
    return
  }
  func.func @transform_0(%arg0: i32) -> (i32, i32) {
    %c0_i32 = arith.constant 0 : i32
    %c0_i32_0 = arith.constant 0 : i32
    return %arg0, %c0_i32 : i32, i32
  }
  func.func @transform_1(%arg0: i32) -> (i32, i32) {
    %c0_i32 = arith.constant 0 : i32
    %c0_i32_0 = arith.constant 0 : i32
    %c0_i32_1 = arith.constant 0 : i32
    return %c0_i32, %c0_i32_0 : i32, i32
  }
  func.func @transform_2(%arg0: i32) -> (i32, i32) {
    %c0_i32 = arith.constant 0 : i32
    %c0_i32_0 = arith.constant 0 : i32
    %c0_i32_1 = arith.constant 0 : i32
    return %c0_i32, %c0_i32_0 : i32, i32
  }
  func.func @transform_3(%arg0: i32) -> (i32, i32) {
    %c0_i32 = arith.constant 0 : i32
    %c0_i32_0 = arith.constant 0 : i32
    %c0_i32_1 = arith.constant 0 : i32
    return %c0_i32, %c0_i32_0 : i32, i32
  }
  func.func @transform_4(%arg0: i32) -> (i32, i32) {
    %c0_i32 = arith.constant 0 : i32
    %c0_i32_0 = arith.constant 0 : i32
    return %arg0, %c0_i32 : i32, i32
  }
  func.func @transform_5(%arg0: i32) -> (i32, i32) {
    %c0_i32 = arith.constant 0 : i32
    %c0_i32_0 = arith.constant 0 : i32
    return %arg0, %c0_i32 : i32, i32
  }
}

</mosaic_0001>

<llo_original>
// kernel: tpu_custom_call.1
$region0: #{tpu_custom_call.1}
  #allocation0 [shape = 'u32[]', space=smem, size = 0x4, offset = 0x4, fixed_abs, tag = 'smem constant byte address 0x4 - core index']
  #allocation1 [shape = 'u32[144,128]{1,0:T(1,128)}', space=vmem, size = 0x12000, scoped, tag = 'internal scratch']
  %s0 = inlined_call_operand.hbm [shape: f32[512,256], index: 0, kind: input, shape index: {}]
  %s1 = inlined_call_operand.hbm [shape: f32[256,128], index: 1, kind: input, shape index: {}]
  %s2 = inlined_call_operand.hbm [shape: f32[128,128], index: 2, kind: input, shape index: {}]
  %s3 = inlined_call_operand.vmem [shape: f32[1,128], index: 3, kind: input, shape index: {}]
  %s4 = inlined_call_operand.hbm [shape: f32[512,128], index: 4, kind: output, shape index: {0}]
  %s5 = inlined_call_operand.hbm [shape: f32[512,128], index: 5, kind: output, shape index: {1}]
  %6 = xla_tuple %s4, %s5
  %s7 = sld [smem:[#allocation0]]
  $region69: #{tpu_custom_call.1} parent=0
    _
  %s9 = ssub.s32 1, %s7
  %s10 = scalar_select 0, %s9, %s7
  $region1: #{tpu_custom_call.1} parent=0
    #allocation2 [shape = 'u8[262144]{0}', space=vmem, size = 0x40000, scoped, tag = 'input window, operand 0']
    #allocation3 [shape = 's32[2]{0}', space=sflag, size = 0x8, scoped, tag = 'scoped memory for tpu_custom_call.1']
    #allocation4 [shape = 's32[2]{0}', space=sflag, size = 0x8, scoped, tag = 'scoped memory for tpu_custom_call.1']
    #allocation5 [shape = 'u8[131072]{0}', space=vmem, size = 0x20000, scoped, tag = 'input window, operand 1, single buffered']
    #allocation6 [shape = 's32[1]{0}', space=sflag, size = 0x4, scoped, tag = 'scoped memory for tpu_custom_call.1']
    #allocation7 [shape = 'u8[65536]{0}', space=vmem, size = 0x10000, scoped, tag = 'input window, operand 2, single buffered']
    #allocation8 [shape = 'u8[131072]{0}', space=vmem, size = 0x20000, scoped, tag = 'output window, operand 0']
    #allocation9 [shape = 'u8[131072]{0}', space=vmem, size = 0x20000, scoped, tag = 'output window, operand 1']
    #allocation10 [shape = 's32[2]{0}', space=sflag, size = 0x8, scoped, tag = 'scoped memory for tpu_custom_call.1']
    %11 = vsyncpa [#allocation3], 0
    %s12 = scalar_lea.sflag [#allocation3], 1
    %13 = vsyncpa %s12, 0
    %14 = vsyncpa [#allocation6], 0
    %15 = vsyncpa [#allocation4], 0
    %s16 = scalar_lea.sflag [#allocation4], 1
    %17 = vsyncpa %s16, 0
    %18 = vsyncpa [#allocation10], 0
    %s19 = scalar_lea.sflag [#allocation10], 1
    %20 = vsyncpa %s19, 0
    loop: start=0, step=1, limit=6
    $region2: #{tpu_custom_call.1} parent=1 // loop_pre_header
      _
    $region3: #{tpu_custom_call.1} parent=1 // loop_header
      %s22 = sphi 0, %s26
      %p23 = scmp.ge.s32.totalorder %s22, 6
      %s32 = sphi 0, %s34
      %s35 = sphi 0, %s32
      %s36 = sphi 0, %s35
      %s52 = sphi 0, %s36
      %s56 = sphi 0, %s56
      %s58 = sphi 0, %s56
      %s59 = sphi 0, %s58
      %s73 = sphi 0, %s59
      %s77 = sphi 0, %s77
      %s79 = sphi 0, %s77
      %s80 = sphi 0, %s79
      %s94 = sphi 0, %s80
      %s98 = sphi 0, %s98
      %s100 = sphi 0, %s98
      %s101 = sphi 0, %s100
      %s115 = sphi 0, %s101
      %s121 = sphi 0, %s123
      %s124 = sphi 0, %s121
      %s125 = sphi 0, %s124
      %s141 = sphi 0, %s125
      %s147 = sphi 0, %s149
      %s150 = sphi 0, %s147
      %s151 = sphi 0, %s150
      %s167 = sphi 0, %s151
    $region4: #{tpu_custom_call.1} parent=1 // loop_header_branch
      %25 = sbr.rel (%p23) target = $region8
    $region5: #{tpu_custom_call.1} parent=1 // loop_body
      %s27 = ssub.s32 %s22, 1
      %s28 = ssub.s32 %s22, 2
      %s29 = sadd.s32 %s22, 1
      %s30 = ssub.s32 %s22, %s29
      %p31 = scmp.eq.s32.totalorder %s30, 0
      %s33 = sadd.s32 %s32, 1
      %s34 = scalar_select %p31, %s32, %s33
      %p37 = pneg %p31
      %p38 = scmp.eq.s32.totalorder %s22, 3
      %p39 = por %p37, %p38
      %p40 = scmp.ne.s32.totalorder %s32, %s35
      %p41 = scmp.eq.s32.totalorder %s22, 0
      %p42 = por %p40, %p41
      %p43 = scmp.ne.s32.totalorder %s32, %s35
      %p44 = scmp.eq.s32.totalorder %s27, 3
      %p45 = por %p43, %p44
      %p46 = scmp.ne.s32.totalorder %s35, %s36
      %p47 = scmp.eq.s32.totalorder %s27, 0
      %p48 = por %p46, %p47
      %p49 = scmp.ne.s32.totalorder %s35, %s36
      %p50 = scmp.eq.s32.totalorder %s28, 3
      %p51 = por %p49, %p50
      %p53 = scmp.ne.s32.totalorder %s36, %s52
      %p54 = scmp.eq.s32.totalorder %s28, 0
      %p55 = por %p53, %p54
      %s57 = sadd.s32 %s56, 1
      %p60 = scmp.eq.s32.totalorder %s22, 3
      %p61 = scmp.ne.s32.totalorder %s56, %s58
      %p62 = scmp.eq.s32.totalorder %s22, 0
      %p63 = por %p61, %p62
      %p64 = scmp.ne.s32.totalorder %s56, %s58
      %p65 = scmp.eq.s32.totalorder %s27, 3
      %p66 = por %p64, %p65
      %p67 = scmp.ne.s32.totalorder %s58, %s59
      %p68 = scmp.eq.s32.totalorder %s27, 0
      %p69 = por %p67, %p68
      %p70 = scmp.ne.s32.totalorder %s58, %s59
      %p71 = scmp.eq.s32.totalorder %s28, 3
      %p72 = por %p70, %p71
      %p74 = scmp.ne.s32.totalorder %s59, %s73
      %p75 = scmp.eq.s32.totalorder %s28, 0
      %p76 = por %p74, %p75
      %s78 = sadd.s32 %s77, 1
      %p81 = scmp.eq.s32.totalorder %s22, 3
      %p82 = scmp.ne.s32.totalorder %s77, %s79
      %p83 = scmp.eq.s32.totalorder %s22, 0
      %p84 = por %p82, %p83
      %p85 = scmp.ne.s32.totalorder %s77, %s79
      %p86 = scmp.eq.s32.totalorder %s27, 3
      %p87 = por %p85, %p86
      %p88 = scmp.ne.s32.totalorder %s79, %s80
      %p89 = scmp.eq.s32.totalorder %s27, 0
      %p90 = por %p88, %p89
      %p91 = scmp.ne.s32.totalorder %s79, %s80
      %p92 = scmp.eq.s32.totalorder %s28, 3
      %p93 = por %p91, %p92
      %p95 = scmp.ne.s32.totalorder %s80, %s94
      %p96 = scmp.eq.s32.totalorder %s28, 0
      %p97 = por %p95, %p96
      %s99 = sadd.s32 %s98, 1
      %p102 = scmp.eq.s32.totalorder %s22, 3
      %p103 = scmp.ne.s32.totalorder %s98, %s100
      %p104 = scmp.eq.s32.totalorder %s22, 0
      %p105 = por %p103, %p104
      %p106 = scmp.ne.s32.totalorder %s98, %s100
      %p107 = scmp.eq.s32.totalorder %s27, 3
      %p108 = por %p106, %p107
      %p109 = scmp.ne.s32.totalorder %s100, %s101
      %p110 = scmp.eq.s32.totalorder %s27, 0
      %p111 = por %p109, %p110
      %p112 = scmp.ne.s32.totalorder %s100, %s101
      %p113 = scmp.eq.s32.totalorder %s28, 3
      %p114 = por %p112, %p113
      %p116 = scmp.ne.s32.totalorder %s101, %s115
      %p117 = scmp.eq.s32.totalorder %s28, 0
      %p118 = por %p116, %p117
      %s119 = ssub.s32 %s22, %s29
      %p120 = scmp.eq.s32.totalorder %s119, 0
      %s122 = sadd.s32 %s121, 1
      %s123 = scalar_select %p120, %s121, %s122
      %p126 = pneg %p120
      %p127 = scmp.eq.s32.totalorder %s22, 3
      %p128 = por %p126, %p127
      %p129 = scmp.ne.s32.totalorder %s121, %s124
      %p130 = scmp.eq.s32.totalorder %s22, 0
      %p131 = por %p129, %p130
      %p132 = scmp.ne.s32.totalorder %s121, %s124
      %p133 = scmp.eq.s32.totalorder %s27, 3
      %p134 = por %p132, %p133
      %p135 = scmp.ne.s32.totalorder %s124, %s125
      %p136 = scmp.eq.s32.totalorder %s27, 0
      %p137 = por %p135, %p136
      %p138 = scmp.ne.s32.totalorder %s124, %s125
      %p139 = scmp.eq.s32.totalorder %s28, 3
      %p140 = por %p138, %p139
      %p142 = scmp.ne.s32.totalorder %s125, %s141
      %p143 = scmp.eq.s32.totalorder %s28, 0
      %p144 = por %p142, %p143
      %s145 = ssub.s32 %s22, %s29
      %p146 = scmp.eq.s32.totalorder %s145, 0
      %s148 = sadd.s32 %s147, 1
      %s149 = scalar_select %p146, %s147, %s148
      %p152 = pneg %p146
      %p153 = scmp.eq.s32.totalorder %s22, 3
      %p154 = por %p152, %p153
      %p155 = scmp.ne.s32.totalorder %s147, %s150
      %p156 = scmp.eq.s32.totalorder %s22, 0
      %p157 = por %p155, %p156
      %p158 = scmp.ne.s32.totalorder %s147, %s150
      %p159 = scmp.eq.s32.totalorder %s27, 3
      %p160 = por %p158, %p159
      %p161 = scmp.ne.s32.totalorder %s150, %s151
      %p162 = scmp.eq.s32.totalorder %s27, 0
      %p163 = por %p161, %p162
      %p164 = scmp.ne.s32.totalorder %s150, %s151
      %p165 = scmp.eq.s32.totalorder %s28, 3
      %p166 = por %p164, %p165
      %p168 = scmp.ne.s32.totalorder %s151, %s167
      %p169 = scmp.eq.s32.totalorder %s28, 0
      %p170 = por %p168, %p169
      %p171 = scmp.le.s32.totalorder 1, %s22
      %p172 = scmp.lt.s32.totalorder %s22, 5
      %p173 = pnand %p171, %p172
      %p174 = pneg %p173
      // Predicated region
      $region9: #{tpu_custom_call.1} parent=5 // pred_check
        _
      $region10: #{tpu_custom_call.1} parent=5 // pred_check_branch
        %176 = sbr.rel (%p173) target = $region12
      $region11: #{tpu_custom_call.1} parent=5 // pred_region
        %s177 = ssub.s32 %s22, 1
        // Predicated region
        $region13: #{tpu_custom_call.1} parent=11 // pred_check
          %p178 = pneg %p69
        $region14: #{tpu_custom_call.1} parent=11 // pred_check_branch
          %180 = sbr.rel (%p178) target = $region16
        $region15: #{tpu_custom_call.1} parent=11 // pred_region
          %s182 = ssub.s32 4096, 4096
          %183 = vsyncadd [#allocation6], %s182
          %s184 = sshll.u32 [#allocation5], 4
          %s185 = int_to_ptr.vmem [resolvable:$true] %s184
          %190 = dma.hbm_to_vmem [thread:$0]  %s1, 4096, %s185, [#allocation6], 128, 128, 8
        $region16: #{tpu_custom_call.1} parent=11 // pred_fallthru
          _
        // Predicated region
        $region17: #{tpu_custom_call.1} parent=11 // pred_check
          %p191 = pneg %p90
        $region18: #{tpu_custom_call.1} parent=11 // pred_check_branch
          %193 = sbr.rel (%p191) target = $region20
        $region19: #{tpu_custom_call.1} parent=11 // pred_region
          %s195 = ssub.s32 2048, 2048
          %196 = vsyncadd [#allocation6], %s195
          %s197 = sshll.u32 [#allocation7], 4
          %s198 = int_to_ptr.vmem [resolvable:$true] %s197
          %203 = dma.hbm_to_vmem [thread:$0]  %s2, 2048, %s198, [#allocation6], 128, 128, 8
        $region20: #{tpu_custom_call.1} parent=11 // pred_fallthru
          _
        // Predicated region
        $region21: #{tpu_custom_call.1} parent=11 // pred_check
          %p204 = pneg %p111
        $region22: #{tpu_custom_call.1} parent=11 // pred_check_branch
          %206 = sbr.rel (%p204) target = $region24
        $region23: #{tpu_custom_call.1} parent=11 // pred_region
          _
        $region24: #{tpu_custom_call.1} parent=11 // pred_fallthru
          _
      $region12: #{tpu_custom_call.1} parent=5 // pred_fallthru
        _
      %p207 = scmp.lt.s32.totalorder %s22, 4
      // Predicated region
      $region25: #{tpu_custom_call.1} parent=5 // pred_check
        %p208 = pneg %p207
      $region26: #{tpu_custom_call.1} parent=5 // pred_check_branch
        %210 = sbr.rel (%p208) target = $region28
      $region27: #{tpu_custom_call.1} parent=5 // pred_region
        // Predicated region
        $region29: #{tpu_custom_call.1} parent=27 // pred_check
          %p211 = pneg %p42
        $region30: #{tpu_custom_call.1} parent=27 // pred_check_branch
          %213 = sbr.rel (%p211) target = $region32
        $region31: #{tpu_custom_call.1} parent=27 // pred_region
          %s214 = sand.u32 %s32, 1
          %s215 = scalar_lea.sflag [#allocation3], %s214
          %s216 = sand.u32 %s32, 1
          %s217 = smul.addr %s216, 256
          %s218 = scalar_lea.vmem [#allocation2], %s217
          %s219 = smul.u32 16, %s22
          %s221 = ssub.s32 4096, 4096
          %222 = vsyncadd %s215, %s221
          %s223 = smul.addr %s219, 2
          %s224 = smul.addr %s223, 128
          %s225 = scalar_lea.hbm %s0, %s224
          %s226 = sshll.u32 %s218, 4
          %s227 = int_to_ptr.vmem [resolvable:$true] %s226
          %232 = dma.hbm_to_vmem [thread:$0]  %s225, 4096, %s227, %s215, 256, 256, 16
        $region32: #{tpu_custom_call.1} parent=27 // pred_fallthru
          _
      $region28: #{tpu_custom_call.1} parent=5 // pred_fallthru
        _
      %p233 = scmp.le.s32.totalorder 1, %s22
      %p234 = scmp.lt.s32.totalorder %s22, 5
      %p235 = pnand %p233, %p234
      %p236 = pneg %p235
      // Predicated region
      $region33: #{tpu_custom_call.1} parent=5 // pred_check
        _
      $region34: #{tpu_custom_call.1} parent=5 // pred_check_branch
        %238 = sbr.rel (%p235) target = $region36
      $region35: #{tpu_custom_call.1} parent=5 // pred_region
        %s239 = ssub.s32 %s22, 1
        %s240 = sand.u32 %s35, 1
        %s241 = scalar_lea.sflag [#allocation3], %s240
        %s242 = sand.u32 %s35, 1
        %s243 = smul.addr %s242, 256
        %s244 = scalar_lea.vmem [#allocation2], %s243
        // Predicated region
        $region37: #{tpu_custom_call.1} parent=35 // pred_check
          %p245 = pneg %p48
        $region38: #{tpu_custom_call.1} parent=35 // pred_check_branch
          %247 = sbr.rel (%p245) target = $region40
        $region39: #{tpu_custom_call.1} parent=35 // pred_region
          %248 = dma.done %s241, 4096
        $region40: #{tpu_custom_call.1} parent=35 // pred_fallthru
          _
        // Predicated region
        $region41: #{tpu_custom_call.1} parent=35 // pred_check
          %p249 = pneg %p69
        $region42: #{tpu_custom_call.1} parent=35 // pred_check_branch
          %251 = sbr.rel (%p249) target = $region44
        $region43: #{tpu_custom_call.1} parent=35 // pred_region
          %252 = dma.done [#allocation6], 4096
        $region44: #{tpu_custom_call.1} parent=35 // pred_fallthru
          _
        // Predicated region
        $region45: #{tpu_custom_call.1} parent=35 // pred_check
          %p253 = pneg %p90
        $region46: #{tpu_custom_call.1} parent=35 // pred_check_branch
          %255 = sbr.rel (%p253) target = $region48
        $region47: #{tpu_custom_call.1} parent=35 // pred_region
          %256 = dma.done [#allocation6], 2048
        $region48: #{tpu_custom_call.1} parent=35 // pred_fallthru
          _
        %s257 = sand.u32 %s35, 1
        %s258 = scalar_lea.sflag [#allocation3], %s257
        %s259 = sand.u32 %s35, 1
        %s260 = smul.addr %s259, 256
        %s261 = scalar_lea.vmem [#allocation2], %s260
        %p262 = pneg %p48
        %p263 = pneg %p45
        %p264 = pneg %p69
        %p265 = pneg %p66
        %p266 = pneg %p90
        %p267 = pneg %p87
        %p268 = pneg %p111
        %p269 = pneg %p108
        %p270 = pneg %p137
        %p271 = pneg %p134
        %s272 = sand.u32 %s124, 1
        %s273 = scalar_lea.sflag [#allocation4], %s272
        %s274 = sand.u32 %s124, 1
        %s275 = smul.addr %s274, 128
        %s276 = scalar_lea.vmem [#allocation8], %s275
        %p277 = pneg %p163
        %p278 = pneg %p160
        %s279 = sand.u32 %s150, 1
        %s280 = scalar_lea.sflag [#allocation10], %s279
        %s281 = sand.u32 %s150, 1
        %s282 = smul.addr %s281, 128
        %s283 = scalar_lea.vmem [#allocation9], %s282
        %s284 = smul.u32 16, %s27
        %s285 = smul.u32 16, %s27
        %s286 = smul.u32 16, %s27
        %v287 = vld [vmem:[%s244] sm:$0xff]
        %v288 = vld [vmem:[%s244 + $0x8] sm:$0xff]
        %v289 = vld [vmem:[%s244 + $0x10] sm:$0xff]
        %v290 = vld [vmem:[%s244 + $0x18] sm:$0xff]
        %v291 = vld [vmem:[%s244 + $0x20] sm:$0xff]
        %v292 = vld [vmem:[%s244 + $0x28] sm:$0xff]
        %v293 = vld [vmem:[%s244 + $0x30] sm:$0xff]
        %v294 = vld [vmem:[%s244 + $0x38] sm:$0xff]
        %v295 = vld [vmem:[%s244 + $0x40] sm:$0xff]
        %v296 = vld [vmem:[%s244 + $0x48] sm:$0xff]
        %v297 = vld [vmem:[%s244 + $0x50] sm:$0xff]
        %v298 = vld [vmem:[%s244 + $0x58] sm:$0xff]
        %v299 = vld [vmem:[%s244 + $0x60] sm:$0xff]
        %v300 = vld [vmem:[%s244 + $0x68] sm:$0xff]
        %v301 = vld [vmem:[%s244 + $0x70] sm:$0xff]
        %v302 = vld [vmem:[%s244 + $0x78] sm:$0xff]
        %v303 = vld [vmem:[%s244 + $0x80] sm:$0xff]
        %v304 = vld [vmem:[%s244 + $0x88] sm:$0xff]
        %v305 = vld [vmem:[%s244 + $0x90] sm:$0xff]
        %v306 = vld [vmem:[%s244 + $0x98] sm:$0xff]
        %v307 = vld [vmem:[%s244 + $0xa0] sm:$0xff]
        %v308 = vld [vmem:[%s244 + $0xa8] sm:$0xff]
        %v309 = vld [vmem:[%s244 + $0xb0] sm:$0xff]
        %v310 = vld [vmem:[%s244 + $0xb8] sm:$0xff]
        %v311 = vld [vmem:[%s244 + $0xc0] sm:$0xff]
        %v312 = vld [vmem:[%s244 + $0xc8] sm:$0xff]
        %v313 = vld [vmem:[%s244 + $0xd0] sm:$0xff]
        %v314 = vld [vmem:[%s244 + $0xd8] sm:$0xff]
        %v315 = vld [vmem:[%s244 + $0xe0] sm:$0xff]
        %v316 = vld [vmem:[%s244 + $0xe8] sm:$0xff]
        %v317 = vld [vmem:[%s244 + $0xf0] sm:$0xff]
        %v318 = vld [vmem:[%s244 + $0xf8] sm:$0xff]
        %v319 = vld [vmem:[#allocation5] sm:$0xff]
        %v320 = vld [vmem:[#allocation5 + $0x8] sm:$0xff]
        %v321 = vld [vmem:[#allocation5 + $0x10] sm:$0xff]
        %v322 = vld [vmem:[#allocation5 + $0x18] sm:$0xff]
        %v323 = vld [vmem:[#allocation5 + $0x20] sm:$0xff]
        %v324 = vld [vmem:[#allocation5 + $0x28] sm:$0xff]
        %v325 = vld [vmem:[#allocation5 + $0x30] sm:$0xff]
        %v326 = vld [vmem:[#allocation5 + $0x38] sm:$0xff]
        %v327 = vld [vmem:[#allocation5 + $0x40] sm:$0xff]
        %v328 = vld [vmem:[#allocation5 + $0x48] sm:$0xff]
        %v329 = vld [vmem:[#allocation5 + $0x50] sm:$0xff]
        %v330 = vld [vmem:[#allocation5 + $0x58] sm:$0xff]
        %v331 = vld [vmem:[#allocation5 + $0x60] sm:$0xff]
        %v332 = vld [vmem:[#allocation5 + $0x68] sm:$0xff]
        %v333 = vld [vmem:[#allocation5 + $0x70] sm:$0xff]
        %v334 = vld [vmem:[#allocation5 + $0x78] sm:$0xff]
        %v335 = vld [vmem:[#allocation5 + $0x80] sm:$0xff]
        %v336 = vld [vmem:[#allocation5 + $0x88] sm:$0xff]
        %v337 = vld [vmem:[#allocation5 + $0x90] sm:$0xff]
        %v338 = vld [vmem:[#allocation5 + $0x98] sm:$0xff]
        %v339 = vld [vmem:[#allocation5 + $0xa0] sm:$0xff]
        %v340 = vld [vmem:[#allocation5 + $0xa8] sm:$0xff]
        %v341 = vld [vmem:[#allocation5 + $0xb0] sm:$0xff]
        %v342 = vld [vmem:[#allocation5 + $0xb8] sm:$0xff]
        %v343 = vld [vmem:[#allocation5 + $0xc0] sm:$0xff]
        %v344 = vld [vmem:[#allocation5 + $0xc8] sm:$0xff]
        %v345 = vld [vmem:[#allocation5 + $0xd0] sm:$0xff]
        %v346 = vld [vmem:[#allocation5 + $0xd8] sm:$0xff]
        %v347 = vld [vmem:[#allocation5 + $0xe0] sm:$0xff]
        %v348 = vld [vmem:[#allocation5 + $0xe8] sm:$0xff]
        %v349 = vld [vmem:[#allocation5 + $0xf0] sm:$0xff]
        %v350 = vld [vmem:[#allocation5 + $0xf8] sm:$0xff]
        %351 = vmatprep.subr.mxu0 0.0
        %352 = vmatpush1.msra.mxu0 %v319
        %353 = vmatprep.subr.mxu0 0.0
        %354 = vmatpush1.msra.mxu0 %v320
        %355 = vmatprep.subr.mxu0 0.0
        %356 = vmatpush1.msra.mxu0 %v321
        %357 = vmatprep.subr.mxu0 0.0
        %358 = vmatpush1.msra.mxu0 %v322
        %359 = vmatprep.subr.mxu0 0.0
        %360 = vmatpush1.msra.mxu0 %v323
        %361 = vmatprep.subr.mxu0 0.0
        %362 = vmatpush1.msra.mxu0 %v324
        %363 = vmatprep.subr.mxu0 0.0
        %364 = vmatpush1.msra.mxu0 %v325
        %365 = vmatprep.subr.mxu0 0.0
        %366 = vmatpush1.msra.mxu0 %v326
        %367 = vmatprep.subr.mxu0 0.0
        %368 = vmatpush1.msra.mxu0 %v327
        %369 = vmatprep.subr.mxu0 0.0
        %370 = vmatpush1.msra.mxu0 %v328
        %371 = vmatprep.subr.mxu0 0.0
        %372 = vmatpush1.msra.mxu0 %v329
        %373 = vmatprep.subr.mxu0 0.0
        %374 = vmatpush1.msra.mxu0 %v330
        %375 = vmatprep.subr.mxu0 0.0
        %376 = vmatpush1.msra.mxu0 %v331
        %377 = vmatprep.subr.mxu0 0.0
        %378 = vmatpush1.msra.mxu0 %v332
        %379 = vmatprep.subr.mxu0 0.0
        %380 = vmatpush1.msra.mxu0 %v333
        %381 = vmatprep.subr.mxu0 0.0
        %382 = vmatpush1.msra.mxu0 %v334
        %383 = vmatprep.subr.mxu0 0.0
        %384 = vmatpush1.msra.mxu0 %v335
        %385 = vmatprep.subr.mxu0 0.0
        %386 = vmatpush1.msra.mxu0 %v336
        %387 = vmatprep.subr.mxu0 0.0
        %388 = vmatpush1.msra.mxu0 %v337
        %389 = vmatprep.subr.mxu0 0.0
        %390 = vmatpush1.msra.mxu0 %v338
        %391 = vmatprep.subr.mxu0 0.0
        %392 = vmatpush1.msra.mxu0 %v339
        %393 = vmatprep.subr.mxu0 0.0
        %394 = vmatpush1.msra.mxu0 %v340
        %395 = vmatprep.subr.mxu0 0.0
        %396 = vmatpush1.msra.mxu0 %v341
        %397 = vmatprep.subr.mxu0 0.0
        %398 = vmatpush1.msra.mxu0 %v342
        %399 = vmatprep.subr.mxu0 0.0
        %400 = vmatpush1.msra.mxu0 %v343
        %401 = vmatprep.subr.mxu0 0.0
        %402 = vmatpush1.msra.mxu0 %v344
        %403 = vmatprep.subr.mxu0 0.0
        %404 = vmatpush1.msra.mxu0 %v345
        %405 = vmatprep.subr.mxu0 0.0
        %406 = vmatpush1.msra.mxu0 %v346
        %407 = vmatprep.subr.mxu0 0.0
        %408 = vmatpush1.msra.mxu0 %v347
        %409 = vmatprep.subr.mxu0 0.0
        %410 = vmatpush1.msra.mxu0 %v348
        %411 = vmatprep.subr.mxu0 0.0
        %412 = vmatpush1.msra.mxu0 %v349
        %413 = vmatprep.subr.mxu0 0.0
        %414 = vmatpush1.msra.mxu0 %v350
        %415 = vmatprep.mubr.f32.mxu0 %v288
        %416 = vmatmul.mubr.f32.gmra.mrb[0].mxu0 %v287
        %v417 = vpop.f32.mrb[0].mxu0
        %v418 = vadd.f32 0.0, %v417
        %v419 = vpop.f32.mrb[0].mxu0
        %420 = vmatprep.mubr.f32.mxu0 %v290
        %421 = vmatmul.mubr.f32.gmra.mrb[0].mxu0 %v289
        %v422 = vpop.f32.mrb[0].mxu0
        %v423 = vadd.f32 0.0, %v422
        %v424 = vpop.f32.mrb[0].mxu0
        %425 = vmatprep.mubr.f32.mxu0 %v292
        %426 = vmatmul.mubr.f32.gmra.mrb[0].mxu0 %v291
        %v427 = vpop.f32.mrb[0].mxu0
        %v428 = vadd.f32 0.0, %v427
        %v429 = vpop.f32.mrb[0].mxu0
        %430 = vmatprep.mubr.f32.mxu0 %v294
        %431 = vmatmul.mubr.f32.gmra.mrb[0].mxu0 %v293
        %v432 = vpop.f32.mrb[0].mxu0
        %v433 = vadd.f32 0.0, %v432
        %v434 = vpop.f32.mrb[0].mxu0
        %435 = vmatprep.mubr.f32.mxu0 %v296
        %436 = vmatmul.mubr.f32.gmra.mrb[0].mxu0 %v295
        %v437 = vpop.f32.mrb[0].mxu0
        %v438 = vadd.f32 0.0, %v437
        %v439 = vpop.f32.mrb[0].mxu0
        %440 = vmatprep.mubr.f32.mxu0 %v298
        %441 = vmatmul.mubr.f32.gmra.mrb[0].mxu0 %v297
        %v442 = vpop.f32.mrb[0].mxu0
        %v443 = vadd.f32 0.0, %v442
        %v444 = vpop.f32.mrb[0].mxu0
        %445 = vmatprep.mubr.f32.mxu0 %v300
        %446 = vmatmul.mubr.f32.gmra.mrb[0].mxu0 %v299
        %v447 = vpop.f32.mrb[0].mxu0
        %v448 = vadd.f32 0.0, %v447
        %v449 = vpop.f32.mrb[0].mxu0
        %450 = vmatprep.mubr.f32.mxu0 %v302
        %451 = vmatmul.mubr.f32.gmra.mrb[0].mxu0 %v301
        %v452 = vpop.f32.mrb[0].mxu0
        %v453 = vadd.f32 0.0, %v452
        %v454 = vpop.f32.mrb[0].mxu0
        %455 = vmatprep.mubr.f32.mxu0 %v304
        %456 = vmatmul.mubr.f32.gmra.mrb[0].mxu0 %v303
        %v457 = vpop.f32.mrb[0].mxu0
        %v458 = vadd.f32 0.0, %v457
        %v459 = vpop.f32.mrb[0].mxu0
        %460 = vmatprep.mubr.f32.mxu0 %v306
        %461 = vmatmul.mubr.f32.gmra.mrb[0].mxu0 %v305
        %v462 = vpop.f32.mrb[0].mxu0
        %v463 = vadd.f32 0.0, %v462
        %v464 = vpop.f32.mrb[0].mxu0
        %465 = vmatprep.mubr.f32.mxu0 %v308
        %466 = vmatmul.mubr.f32.gmra.mrb[0].mxu0 %v307
        %v467 = vpop.f32.mrb[0].mxu0
        %v468 = vadd.f32 0.0, %v467
        %v469 = vpop.f32.mrb[0].mxu0
        %470 = vmatprep.mubr.f32.mxu0 %v310
        %471 = vmatmul.mubr.f32.gmra.mrb[0].mxu0 %v309
        %v472 = vpop.f32.mrb[0].mxu0
        %v473 = vadd.f32 0.0, %v472
        %v474 = vpop.f32.mrb[0].mxu0
        %475 = vmatprep.mubr.f32.mxu0 %v312
        %476 = vmatmul.mubr.f32.gmra.mrb[0].mxu0 %v311
        %v477 = vpop.f32.mrb[0].mxu0
        %v478 = vadd.f32 0.0, %v477
        %v479 = vpop.f32.mrb[0].mxu0
        %480 = vmatprep.mubr.f32.mxu0 %v314
        %481 = vmatmul.mubr.f32.gmra.mrb[0].mxu0 %v313
        %v482 = vpop.f32.mrb[0].mxu0
        %v483 = vadd.f32 0.0, %v482
        %v484 = vpop.f32.mrb[0].mxu0
        %485 = vmatprep.mubr.f32.mxu0 %v316
        %486 = vmatmul.mubr.f32.gmra.mrb[0].mxu0 %v315
        %v487 = vpop.f32.mrb[0].mxu0
        %v488 = vadd.f32 0.0, %v487
        %v489 = vpop.f32.mrb[0].mxu0
        %490 = vmatprep.mubr.f32.mxu0 %v318
        %491 = vmatmul.mubr.f32.gmra.mrb[0].mxu0 %v317
        %v492 = vpop.f32.mrb[0].mxu0
        %v493 = vadd.f32 0.0, %v492
        %v494 = vpop.f32.mrb[0].mxu0
        %495 = vdwg.mxu0
        %v496 = vmax.f32 %v418, 0.0
        %v497 = vmax.f32 %v423, 0.0
        %v498 = vmax.f32 %v428, 0.0
        %v499 = vmax.f32 %v433, 0.0
        %v500 = vmax.f32 %v438, 0.0
        %v501 = vmax.f32 %v443, 0.0
        %v502 = vmax.f32 %v448, 0.0
        %v503 = vmax.f32 %v453, 0.0
        %v504 = vmax.f32 %v458, 0.0
        %v505 = vmax.f32 %v463, 0.0
        %v506 = vmax.f32 %v468, 0.0
        %v507 = vmax.f32 %v473, 0.0
        %v508 = vmax.f32 %v478, 0.0
        %v509 = vmax.f32 %v483, 0.0
        %v510 = vmax.f32 %v488, 0.0
        %v511 = vmax.f32 %v493, 0.0
        %512 = vst [vmem:[%s276] sm:$0xff] %v496
        %513 = vst [vmem:[%s276 + $0x8] sm:$0xff] %v497
        %514 = vst [vmem:[%s276 + $0x10] sm:$0xff] %v498
        %515 = vst [vmem:[%s276 + $0x18] sm:$0xff] %v499
        %516 = vst [vmem:[%s276 + $0x20] sm:$0xff] %v500
        %517 = vst [vmem:[%s276 + $0x28] sm:$0xff] %v501
        %518 = vst [vmem:[%s276 + $0x30] sm:$0xff] %v502
        %519 = vst [vmem:[%s276 + $0x38] sm:$0xff] %v503
        %520 = vst [vmem:[%s276 + $0x40] sm:$0xff] %v504
        %521 = vst [vmem:[%s276 + $0x48] sm:$0xff] %v505
        %522 = vst [vmem:[%s276 + $0x50] sm:$0xff] %v506
        %523 = vst [vmem:[%s276 + $0x58] sm:$0xff] %v507
        %524 = vst [vmem:[%s276 + $0x60] sm:$0xff] %v508
        %525 = vst [vmem:[%s276 + $0x68] sm:$0xff] %v509
        %526 = vst [vmem:[%s276 + $0x70] sm:$0xff] %v510
        %527 = vst [vmem:[%s276 + $0x78] sm:$0xff] %v511
        %v528 = vld [vmem:[#allocation7] sm:$0xff]
        %v529 = vld [vmem:[#allocation7 + $0x8] sm:$0xff]
        %v530 = vld [vmem:[#allocation7 + $0x10] sm:$0xff]
        %v531 = vld [vmem:[#allocation7 + $0x18] sm:$0xff]
        %v532 = vld [vmem:[#allocation7 + $0x20] sm:$0xff]
        %v533 = vld [vmem:[#allocation7 + $0x28] sm:$0xff]
        %v534 = vld [vmem:[#allocation7 + $0x30] sm:$0xff]
        %v535 = vld [vmem:[#allocation7 + $0x38] sm:$0xff]
        %v536 = vld [vmem:[#allocation7 + $0x40] sm:$0xff]
        %v537 = vld [vmem:[#allocation7 + $0x48] sm:$0xff]
        %v538 = vld [vmem:[#allocation7 + $0x50] sm:$0xff]
        %v539 = vld [vmem:[#allocation7 + $0x58] sm:$0xff]
        %v540 = vld [vmem:[#allocation7 + $0x60] sm:$0xff]
        %v541 = vld [vmem:[#allocation7 + $0x68] sm:$0xff]
        %v542 = vld [vmem:[#allocation7 + $0x70] sm:$0xff]
        %v543 = vld [vmem:[#allocation7 + $0x78] sm:$0xff]
        %v544 = vld [vmem:[%s3] sm:$0x1]
        %v546 = vlaneseq
        %v547 = vshrl.u32 %v546, 7
        %v548 = vsub.s32 0, %v547
        %v549 = vrot.slane %v544, %v548
        %551 = vmatprep.subr.mxu0 0.0
        %552 = vmatpush1.msra.mxu0 %v528
        %553 = vmatprep.subr.mxu0 0.0
        %554 = vmatpush1.msra.mxu0 %v529
        %555 = vmatprep.subr.mxu0 0.0
        %556 = vmatpush1.msra.mxu0 %v530
        %557 = vmatprep.subr.mxu0 0.0
        %558 = vmatpush1.msra.mxu0 %v531
        %559 = vmatprep.subr.mxu0 0.0
        %560 = vmatpush1.msra.mxu0 %v532
        %561 = vmatprep.subr.mxu0 0.0
        %562 = vmatpush1.msra.mxu0 %v533
        %563 = vmatprep.subr.mxu0 0.0
        %564 = vmatpush1.msra.mxu0 %v534
        %565 = vmatprep.subr.mxu0 0.0
        %566 = vmatpush1.msra.mxu0 %v535
        %567 = vmatprep.subr.mxu0 0.0
        %568 = vmatpush1.msra.mxu0 %v536
        %569 = vmatprep.subr.mxu0 0.0
        %570 = vmatpush1.msra.mxu0 %v537
        %571 = vmatprep.subr.mxu0 0.0
        %572 = vmatpush1.msra.mxu0 %v538
        %573 = vmatprep.subr.mxu0 0.0
        %574 = vmatpush1.msra.mxu0 %v539
        %575 = vmatprep.subr.mxu0 0.0
        %576 = vmatpush1.msra.mxu0 %v540
        %577 = vmatprep.subr.mxu0 0.0
        %578 = vmatpush1.msra.mxu0 %v541
        %579 = vmatprep.subr.mxu0 0.0
        %580 = vmatpush1.msra.mxu0 %v542
        %581 = vmatprep.subr.mxu0 0.0
        %582 = vmatpush1.msra.mxu0 %v543
        %583 = vmatprep.subr.mxu0 0.0
        %584 = vmatpush1.msra.mxu0 0.0
        %585 = vmatprep.subr.mxu0 0.0
        %586 = vmatpush1.msra.mxu0 0.0
        %587 = vmatprep.subr.mxu0 0.0
        %588 = vmatpush1.msra.mxu0 0.0
        %589 = vmatprep.subr.mxu0 0.0
        %590 = vmatpush1.msra.mxu0 0.0
        %591 = vmatprep.subr.mxu0 0.0
        %592 = vmatpush1.msra.mxu0 0.0
        %593 = vmatprep.subr.mxu0 0.0
        %594 = vmatpush1.msra.mxu0 0.0
        %595 = vmatprep.subr.mxu0 0.0
        %596 = vmatpush1.msra.mxu0 0.0
        %597 = vmatprep.subr.mxu0 0.0
        %598 = vmatpush1.msra.mxu0 0.0
        %599 = vmatprep.subr.mxu0 0.0
        %600 = vmatpush1.msra.mxu0 0.0
        %601 = vmatprep.subr.mxu0 0.0
        %602 = vmatpush1.msra.mxu0 0.0
        %603 = vmatprep.subr.mxu0 0.0
        %604 = vmatpush1.msra.mxu0 0.0
        %605 = vmatprep.subr.mxu0 0.0
        %606 = vmatpush1.msra.mxu0 0.0
        %607 = vmatprep.subr.mxu0 0.0
        %608 = vmatpush1.msra.mxu0 0.0
        %609 = vmatprep.subr.mxu0 0.0
        %610 = vmatpush1.msra.mxu0 0.0
        %611 = vmatprep.subr.mxu0 0.0
        %612 = vmatpush1.msra.mxu0 0.0
        %613 = vmatprep.subr.mxu0 0.0
        %614 = vmatpush1.msra.mxu0 0.0
        %615 = vmatprep.mubr.f32.mxu0 0.0
        %616 = vmatmul.mubr.f32.gmra.mrb[0].mxu0 %v496
        %v617 = vpop.f32.mrb[0].mxu0
        %v618 = vadd.f32 %v549, %v617
        %v619 = vpop.f32.mrb[0].mxu0
        %620 = vmatprep.mubr.f32.mxu0 0.0
        %621 = vmatmul.mubr.f32.gmra.mrb[0].mxu0 %v497
        %v622 = vpop.f32.mrb[0].mxu0
        %v623 = vadd.f32 %v549, %v622
        %v624 = vpop.f32.mrb[0].mxu0
        %625 = vmatprep.mubr.f32.mxu0 0.0
        %626 = vmatmul.mubr.f32.gmra.mrb[0].mxu0 %v498
        %v627 = vpop.f32.mrb[0].mxu0
        %v628 = vadd.f32 %v549, %v627
        %v629 = vpop.f32.mrb[0].mxu0
        %630 = vmatprep.mubr.f32.mxu0 0.0
        %631 = vmatmul.mubr.f32.gmra.mrb[0].mxu0 %v499
        %v632 = vpop.f32.mrb[0].mxu0
        %v633 = vadd.f32 %v549, %v632
        %v634 = vpop.f32.mrb[0].mxu0
        %635 = vmatprep.mubr.f32.mxu0 0.0
        %636 = vmatmul.mubr.f32.gmra.mrb[0].mxu0 %v500
        %v637 = vpop.f32.mrb[0].mxu0
        %v638 = vadd.f32 %v549, %v637
        %v639 = vpop.f32.mrb[0].mxu0
        %640 = vmatprep.mubr.f32.mxu0 0.0
        %641 = vmatmul.mubr.f32.gmra.mrb[0].mxu0 %v501
        %v642 = vpop.f32.mrb[0].mxu0
        %v643 = vadd.f32 %v549, %v642
        %v644 = vpop.f32.mrb[0].mxu0
        %645 = vmatprep.mubr.f32.mxu0 0.0
        %646 = vmatmul.mubr.f32.gmra.mrb[0].mxu0 %v502
        %v647 = vpop.f32.mrb[0].mxu0
        %v648 = vadd.f32 %v549, %v647
        %v649 = vpop.f32.mrb[0].mxu0
        %650 = vmatprep.mubr.f32.mxu0 0.0
        %651 = vmatmul.mubr.f32.gmra.mrb[0].mxu0 %v503
        %v652 = vpop.f32.mrb[0].mxu0
        %v653 = vadd.f32 %v549, %v652
        %v654 = vpop.f32.mrb[0].mxu0
        %655 = vmatprep.mubr.f32.mxu0 0.0
        %656 = vmatmul.mubr.f32.gmra.mrb[0].mxu0 %v504
        %v657 = vpop.f32.mrb[0].mxu0
        %v658 = vadd.f32 %v549, %v657
        %v659 = vpop.f32.mrb[0].mxu0
        %660 = vmatprep.mubr.f32.mxu0 0.0
        %661 = vmatmul.mubr.f32.gmra.mrb[0].mxu0 %v505
        %v662 = vpop.f32.mrb[0].mxu0
        %v663 = vadd.f32 %v549, %v662
        %v664 = vpop.f32.mrb[0].mxu0
        %665 = vmatprep.mubr.f32.mxu0 0.0
        %666 = vmatmul.mubr.f32.gmra.mrb[0].mxu0 %v506
        %v667 = vpop.f32.mrb[0].mxu0
        %v668 = vadd.f32 %v549, %v667
        %v669 = vpop.f32.mrb[0].mxu0
        %670 = vmatprep.mubr.f32.mxu0 0.0
        %671 = vmatmul.mubr.f32.gmra.mrb[0].mxu0 %v507
        %v672 = vpop.f32.mrb[0].mxu0
        %v673 = vadd.f32 %v549, %v672
        %v674 = vpop.f32.mrb[0].mxu0
        %675 = vmatprep.mubr.f32.mxu0 0.0
        %676 = vmatmul.mubr.f32.gmra.mrb[0].mxu0 %v508
        %v677 = vpop.f32.mrb[0].mxu0
        %v678 = vadd.f32 %v549, %v677
        %v679 = vpop.f32.mrb[0].mxu0
        %680 = vmatprep.mubr.f32.mxu0 0.0
        %681 = vmatmul.mubr.f32.gmra.mrb[0].mxu0 %v509
        %v682 = vpop.f32.mrb[0].mxu0
        %v683 = vadd.f32 %v549, %v682
        %v684 = vpop.f32.mrb[0].mxu0
        %685 = vmatprep.mubr.f32.mxu0 0.0
        %686 = vmatmul.mubr.f32.gmra.mrb[0].mxu0 %v510
        %v687 = vpop.f32.mrb[0].mxu0
        %v688 = vadd.f32 %v549, %v687
        %v689 = vpop.f32.mrb[0].mxu0
        %690 = vmatprep.mubr.f32.mxu0 0.0
        %691 = vmatmul.mubr.f32.gmra.mrb[0].mxu0 %v511
        %v692 = vpop.f32.mrb[0].mxu0
        %v693 = vadd.f32 %v549, %v692
        %v694 = vpop.f32.mrb[0].mxu0
        %695 = vdwg.mxu0
        %696 = vst [vmem:[%s283] sm:$0xff] %v618
        %697 = vst [vmem:[%s283 + $0x8] sm:$0xff] %v623
        %698 = vst [vmem:[%s283 + $0x10] sm:$0xff] %v628
        %699 = vst [vmem:[%s283 + $0x18] sm:$0xff] %v633
        %700 = vst [vmem:[%s283 + $0x20] sm:$0xff] %v638
        %701 = vst [vmem:[%s283 + $0x28] sm:$0xff] %v643
        %702 = vst [vmem:[%s283 + $0x30] sm:$0xff] %v648
        %703 = vst [vmem:[%s283 + $0x38] sm:$0xff] %v653
        %704 = vst [vmem:[%s283 + $0x40] sm:$0xff] %v658
        %705 = vst [vmem:[%s283 + $0x48] sm:$0xff] %v663
        %706 = vst [vmem:[%s283 + $0x50] sm:$0xff] %v668
        %707 = vst [vmem:[%s283 + $0x58] sm:$0xff] %v673
        %708 = vst [vmem:[%s283 + $0x60] sm:$0xff] %v678
        %709 = vst [vmem:[%s283 + $0x68] sm:$0xff] %v683
        %710 = vst [vmem:[%s283 + $0x70] sm:$0xff] %v688
        %711 = vst [vmem:[%s283 + $0x78] sm:$0xff] %v693
        %s712 = sand.u32 %s124, 1
        %s713 = scalar_lea.sflag [#allocation4], %s712
        %s714 = sand.u32 %s124, 1
        %s715 = smul.addr %s714, 128
        %s716 = scalar_lea.vmem [#allocation8], %s715
        %s717 = sand.u32 %s150, 1
        %s718 = scalar_lea.sflag [#allocation10], %s717
        %s719 = sand.u32 %s150, 1
        %s720 = smul.addr %s719, 128
        %s721 = scalar_lea.vmem [#allocation9], %s720
        // Predicated region
        $region49: #{tpu_custom_call.1} parent=35 // pred_check
          %p722 = pneg %p134
        $region50: #{tpu_custom_call.1} parent=35 // pred_check_branch
          %724 = sbr.rel (%p722) target = $region52
        $region51: #{tpu_custom_call.1} parent=35 // pred_region
          %s725 = smul.u32 16, %s27
          %s727 = ssub.s32 2048, 2048
          %728 = vsyncadd %s713, %s727
          %s729 = smul.addr %s725, 128
          %s730 = scalar_lea.hbm %s4, %s729
          %s731 = sshll.u32 %s716, 4
          %s732 = int_to_ptr.vmem [resolvable:$true] %s731
          %737 = dma.vmem_to_hbm [thread:$0]  %s732, 2048, %s730, %s713, 128, 128, 8
        $region52: #{tpu_custom_call.1} parent=35 // pred_fallthru
          _
        // Predicated region
        $region53: #{tpu_custom_call.1} parent=35 // pred_check
          %p738 = pneg %p160
        $region54: #{tpu_custom_call.1} parent=35 // pred_check_branch
          %740 = sbr.rel (%p738) target = $region56
        $region55: #{tpu_custom_call.1} parent=35 // pred_region
          %s741 = smul.u32 16, %s27
          %s743 = ssub.s32 2048, 2048
          %744 = vsyncadd %s718, %s743
          %s745 = smul.addr %s741, 128
          %s746 = scalar_lea.hbm %s5, %s745
          %s747 = sshll.u32 %s721, 4
          %s748 = int_to_ptr.vmem [resolvable:$true] %s747
          %753 = dma.vmem_to_hbm [thread:$0]  %s748, 2048, %s746, %s718, 128, 128, 8
        $region56: #{tpu_custom_call.1} parent=35 // pred_fallthru
          _
      $region36: #{tpu_custom_call.1} parent=5 // pred_fallthru
        _
      %p754 = scmp.le.s32.totalorder 2, %s22
      // Predicated region
      $region57: #{tpu_custom_call.1} parent=5 // pred_check
        %p755 = pneg %p754
      $region58: #{tpu_custom_call.1} parent=5 // pred_check_branch
        %757 = sbr.rel (%p755) target = $region60
      $region59: #{tpu_custom_call.1} parent=5 // pred_region
        %s758 = ssub.s32 %s22, 2
        // Predicated region
        $region61: #{tpu_custom_call.1} parent=59 // pred_check
          %p759 = pneg %p140
        $region62: #{tpu_custom_call.1} parent=59 // pred_check_branch
          %761 = sbr.rel (%p759) target = $region64
        $region63: #{tpu_custom_call.1} parent=59 // pred_region
          %s762 = sand.u32 %s125, 1
          %s763 = scalar_lea.sflag [#allocation4], %s762
          %s764 = sand.u32 %s125, 1
          %s765 = smul.addr %s764, 128
          %s766 = scalar_lea.vmem [#allocation8], %s765
          %767 = dma.done %s763, 2048
        $region64: #{tpu_custom_call.1} parent=59 // pred_fallthru
          _
        // Predicated region
        $region65: #{tpu_custom_call.1} parent=59 // pred_check
          %p768 = pneg %p166
        $region66: #{tpu_custom_call.1} parent=59 // pred_check_branch
          %770 = sbr.rel (%p768) target = $region68
        $region67: #{tpu_custom_call.1} parent=59 // pred_region
          %s771 = sand.u32 %s151, 1
          %s772 = scalar_lea.sflag [#allocation10], %s771
          %s773 = sand.u32 %s151, 1
          %s774 = smul.addr %s773, 128
          %s775 = scalar_lea.vmem [#allocation9], %s774
          %776 = dma.done %s772, 2048
        $region68: #{tpu_custom_call.1} parent=59 // pred_fallthru
          _
      $region60: #{tpu_custom_call.1} parent=5 // pred_fallthru
        _
    $region6: #{tpu_custom_call.1} parent=1 // loop_footer
      %s26 = sadd.s32 1, %s22
    $region7: #{tpu_custom_call.1} parent=1 // loop_footer_branch
      %21 = sbr.rel target = $region3
    $region8: #{tpu_custom_call.1} parent=1 // loop_exit
      _
    %777 = vsyncpa [#allocation3], 1
    %s778 = scalar_lea.sflag [#allocation3], 1
    %779 = vsyncpa %s778, 1
    %780 = vsyncpa [#allocation6], 1
    %781 = vsyncpa [#allocation4], 1
    %s782 = scalar_lea.sflag [#allocation4], 1
    %783 = vsyncpa %s782, 1
    %784 = vsyncpa [#allocation10], 1
    %s785 = scalar_lea.sflag [#allocation10], 1
    %786 = vsyncpa %s785, 1

</llo_original>
